<compile_context>
chip_gen: v7x
topology: tpu7x:2x2x1
jax: 0.10.0
libtpu: 0.0.40
codegen_flags: <defaults>
</compile_context>

<pallas_src>
import jax
import jax.numpy as jnp
from jax.experimental import pallas as pl
from jax.experimental.pallas import tpu as pltpu


# ----------------------------------------------------------------------------
# Layout plumbing (wrapper-side, free XLA reshape/transpose)
#   (B, C, H, W) -> (B, 4, C, hh*ww)  with quadrant order (0,0),(0,1),(1,0),(1,1)
# ----------------------------------------------------------------------------
def _to_quadrant_layout(x):
    B, C, H, W = x.shape
    hh, ww = H // 2, W // 2
    xq = x.reshape(B, C, 2, hh, 2, ww)
    xq = xq.transpose(0, 2, 4, 1, 3, 5)          # (B, 2, 2, C, hh, ww)
    return xq.reshape(B, 4, C, hh * ww)


def _from_quadrant_layout(yq, H, W):
    B, _, C, S = yq.shape
    hh, ww = H // 2, W // 2
    y = yq.reshape(B, 2, 2, C, hh, ww).transpose(0, 3, 1, 4, 2, 5)  # (B,C,2,hh,2,ww)
    return y.reshape(B, C, H, W)


def _hardswish(x):
    return x * jnp.clip(x + 3.0, 0.0, 6.0) * (1.0 / 6.0)


def _hardsigmoid(x):
    return jnp.clip(x * (1.0 / 6.0) + 0.5, 0.0, 1.0)


_COMPILER_PARAMS = pltpu.CompilerParams(
    dimension_semantics=("parallel",),          # megacore-shard over batch on v7x
    vmem_limit_bytes=32 * 1024 * 1024,          # conservative for v7x's 64 MiB VMEM
)


# ----------------------------------------------------------------------------
# Standalone SE-gating block (mid-network building block):
#   x : (B, C, H, W), w1/b1 : (R, C)/(R,), w2/b2 : (C, R)/(C,)
# Returns the rescaled feature map (B, C, H, W).
# ----------------------------------------------------------------------------
def quadrant_se(x, w1, b1, w2, b2, *, mxu_dtype=jnp.bfloat16):
    B, C, H, W = x.shape
    assert H % 2 == 0 and W % 2 == 0, "quadrant pooling assumes even H, W"
    R = w1.shape[0]
    hh, ww = H // 2, W // 2
    S = hh * ww

    xq = _to_quadrant_layout(x)                  # (B, 4, C, S)
    w1t = w1.T.astype(mxu_dtype)                 # (C, R)  bf16 MXU operand
    w2t = w2.T.astype(mxu_dtype)                 # (R, C)
    b1r = b1.reshape(1, R).astype(jnp.float32)
    b2r = b2.reshape(1, C).astype(jnp.float32)

    def kernel(x_ref, w1_ref, b1_ref, w2_ref, b2_ref, o_ref):
        xb = x_ref[0]                                         # (4, C, S)
        avg_p = jnp.mean(xb, axis=-1)                         # (4, C) one lane reduction
        max_p = jnp.max(xb, axis=-1)                          # (4, C)
        pooled = jnp.concatenate([avg_p, max_p], axis=0)      # (8, C): one MLP pass
        h = jnp.dot(pooled.astype(mxu_dtype), w1_ref[...],
                    preferred_element_type=jnp.float32) + b1_ref[...]   # (8, R)
        h = _hardswish(h)
        t = jnp.dot(h.astype(mxu_dtype), w2_ref[...],
                    preferred_element_type=jnp.float32) + b2_ref[...]   # (8, C)
        s = _hardsigmoid(t[:4] + t[4:])                       # (4, C) gate per quadrant
        # Single full-block, unmasked store of the rescaled activation.
        o_ref[0] = (xb * s[:, :, None]).astype(o_ref.dtype)

    cost = pl.CostEstimate(
        flops=B * (5 * C * H * W + 32 * C * R + 20 * C),
        transcendentals=0,
        bytes_accessed=8 * B * C * H * W + 4 * C * R + 4 * (R + C),
    )

    yq = pl.pallas_call(
        kernel,
        out_shape=jax.ShapeDtypeStruct((B, 4, C, S), x.dtype),
        grid=(B,),
        in_specs=[
            pl.BlockSpec((1, 4, C, S), lambda b: (b, 0, 0, 0)),
            pl.BlockSpec((C, R), lambda b: (0, 0)),
            pl.BlockSpec((1, R), lambda b: (0, 0)),
            pl.BlockSpec((R, C), lambda b: (0, 0)),
            pl.BlockSpec((1, C), lambda b: (0, 0)),
        ],
        out_specs=pl.BlockSpec((1, 4, C, S), lambda b: (b, 0, 0, 0)),
        compiler_params=_COMPILER_PARAMS,
        cost_estimate=cost,
    )(xq, w1t, b1r, w2t, b2r)

    return _from_quadrant_layout(yq, H, W)


# ----------------------------------------------------------------------------
# Fused SE-gating + classifier head (production path):
#   logits[b] = mean_{H,W}( SE(x)[b] ) @ Wc^T + bc
# The rescale is folded into the pooled features, so x is read once and only
# (B, num_classes) is written back to HBM.
# ----------------------------------------------------------------------------
def quadrant_se_head(x, w1, b1, w2, b2, wc, bc, *, mxu_dtype=jnp.bfloat16):
    B, C, H, W = x.shape
    assert H % 2 == 0 and W % 2 == 0, "quadrant pooling assumes even H, W"
    R = w1.shape[0]
    N = wc.shape[0]
    hh, ww = H // 2, W // 2
    S = hh * ww

    xq = _to_quadrant_layout(x)                  # (B, 4, C, S)
    w1t = w1.T.astype(mxu_dtype)                 # (C, R)
    w2t = w2.T.astype(mxu_dtype)                 # (R, C)
    wct = wc.T.astype(mxu_dtype)                 # (C, N)
    b1r = b1.reshape(1, R).astype(jnp.float32)
    b2r = b2.reshape(1, C).astype(jnp.float32)
    bcr = bc.reshape(1, N).astype(jnp.float32)

    def kernel(x_ref, w1_ref, b1_ref, w2_ref, b2_ref, wc_ref, bc_ref, o_ref):
        xb = x_ref[0]                                         # (4, C, S)
        avg_p = jnp.mean(xb, axis=-1)                         # (4, C)
        max_p = jnp.max(xb, axis=-1)                          # (4, C)
        pooled = jnp.concatenate([avg_p, max_p], axis=0)      # (8, C)
        h = jnp.dot(pooled.astype(mxu_dtype), w1_ref[...],
                    preferred_element_type=jnp.float32) + b1_ref[...]   # (8, R)
        h = _hardswish(h)
        t = jnp.dot(h.astype(mxu_dtype), w2_ref[...],
                    preferred_element_type=jnp.float32) + b2_ref[...]   # (8, C)
        s = _hardsigmoid(t[:4] + t[4:])                       # (4, C)
        # Fold rescale into the global average pool:
        #   mean_{H,W}(x * s) = (1/4) * sum_q s[q] * mean_{quadrant q}(x)
        # -> no per-pixel multiply, no lane re-broadcast, no activation store.
        feat = 0.25 * jnp.sum(s * avg_p, axis=0, keepdims=True)          # (1, C)
        logits = jnp.dot(feat.astype(mxu_dtype), wc_ref[...],
                         preferred_element_type=jnp.float32) + bc_ref[...]  # (1, N)
        o_ref[0] = logits.astype(o_ref.dtype)

    cost = pl.CostEstimate(
        flops=B * (4 * C * H * W + 32 * C * R + 20 * C + 2 * C * N),
        transcendentals=0,
        bytes_accessed=4 * B * C * H * W + 4 * B * N
                       + 2 * (2 * C * R + C * N) + 4 * (R + C + N),
    )

    logits3 = pl.pallas_call(
        kernel,
        out_shape=jax.ShapeDtypeStruct((B, 1, N), jnp.float32),
        grid=(B,),
        in_specs=[
            pl.BlockSpec((1, 4, C, S), lambda b: (b, 0, 0, 0)),
            pl.BlockSpec((C, R), lambda b: (0, 0)),
            pl.BlockSpec((1, R), lambda b: (0, 0)),
            pl.BlockSpec((R, C), lambda b: (0, 0)),
            pl.BlockSpec((1, C), lambda b: (0, 0)),
            pl.BlockSpec((C, N), lambda b: (0, 0)),
            pl.BlockSpec((1, N), lambda b: (0, 0)),
        ],
        out_specs=pl.BlockSpec((1, 1, N), lambda b: (b, 0, 0)),
        compiler_params=_COMPILER_PARAMS,
        cost_estimate=cost,
    )(xq, w1t, b1r, w2t, b2r, wct, bcr)

    return logits3.reshape(B, N)


# ----------------------------------------------------------------------------
# Pure-JAX reference (matches the PyTorch forward of the SE block + head)
# ----------------------------------------------------------------------------
def qse_reference(x, w1, b1, w2, b2):
    B, C, H, W = x.shape
    hh, ww = H // 2, W // 2
    xq = x.reshape(B, C, 2, hh, 2, ww)
    avg = xq.mean(axis=(3, 5))          # AdaptiveAvgPool2d((2,2)), H/W even
    mx = xq.max(axis=(3, 5))            # AdaptiveMaxPool2d((2,2))

    def fc(p):
        h = jnp.einsum('rc,bcij->brij', w1, p) + b1[None, :, None, None]
        h = h * jnp.clip(h + 3.0, 0.0, 6.0) / 6.0
        return jnp.einsum('cr,brij->bcij', w2, h) + b2[None, :, None, None]

    s = jnp.clip((fc(avg) + fc(mx)) / 6.0 + 0.5, 0.0, 1.0)
    top = jnp.concatenate([x[:, :, :hh, :ww] * s[:, :, 0:1, 0:1],
                           x[:, :, :hh, ww:] * s[:, :, 0:1, 1:2]], axis=3)
    bot = jnp.concatenate([x[:, :, hh:, :ww] * s[:, :, 1:2, 0:1],
                           x[:, :, hh:, ww:] * s[:, :, 1:2, 1:2]], axis=3)
    return jnp.concatenate([top, bot], axis=2)


if __name__ == "__main__":
    B, C, R, H, W = 2, 40, 10, 16, 16
    NUM_CLASSES = 10

    key = jax.random.PRNGKey(0)
    ks = jax.random.split(key, 7)
    x = jax.random.normal(ks[0], (B, C, H, W), jnp.float32)
    w1 = jax.random.normal(ks[1], (R, C), jnp.float32) * 0.1
    b1 = jax.random.normal(ks[2], (R,), jnp.float32) * 0.1
    w2 = jax.random.normal(ks[3], (C, R), jnp.float32) * 0.1
    b2 = jax.random.normal(ks[4], (C,), jnp.float32) * 0.1
    wc = jax.random.normal(ks[5], (NUM_CLASSES, C), jnp.float32) * 0.1
    bc = jax.random.normal(ks[6], (NUM_CLASSES,), jnp.float32) * 0.1

    # Fused production path: SE gating + global-avg-pool + Linear in one kernel.
    logits = quadrant_se_head(x, w1, b1, w2, b2, wc, bc)
    jax.block_until_ready(logits)

    # Standalone SE block (mid-network building block) for feature-map check.
    y = quadrant_se(x, w1, b1, w2, b2)
    jax.block_until_ready(y)

    # References (f32).  Tolerances account for bf16 MXU operands (f32 accumulation).
    y_ref = qse_reference(x, w1, b1, w2, b2)
    logits_ref = y_ref.mean(axis=(2, 3)) @ wc.T + bc
    assert jnp.allclose(y, y_ref, atol=2e-2, rtol=2e-2), "SE block mismatch"
    assert jnp.allclose(logits, logits_ref, atol=2e-2, rtol=2e-2), "fused head mismatch"

    print("KERNEL_OK")
</pallas_src>

<mosaic_0001>
module attributes {stable_mosaic.version = 11 : i64} {
  func.func @kernel(%arg0: i32, %arg1: memref<1x4x40x64xf32, #tpu.memory_space<vmem>>, %arg2: memref<40x10xbf16, #tpu.memory_space<vmem>>, %arg3: memref<1x10xf32, #tpu.memory_space<vmem>>, %arg4: memref<10x40xbf16, #tpu.memory_space<vmem>>, %arg5: memref<1x40xf32, #tpu.memory_space<vmem>>, %arg6: memref<40x10xbf16, #tpu.memory_space<vmem>>, %arg7: memref<1x10xf32, #tpu.memory_space<vmem>>, %arg8: memref<1x1x10xf32, #tpu.memory_space<vmem>>) attributes {dimension_semantics = [#tpu.dimension_semantics<parallel>], iteration_bounds = array<i64: 2>, scalar_prefetch = 0 : i64, scratch_operands = 0 : i64, tpu.core_type = #tpu.core_type<tc>, window_params = [{transform_indices = @transform_0, window_bounds = array<i64: 1, 4, 40, 64>}, {pipeline_mode = #tpu.pipeline_mode<synchronous>, transform_indices = @transform_1, window_bounds = array<i64: 40, 10>}, {pipeline_mode = #tpu.pipeline_mode<synchronous>, transform_indices = @transform_2, window_bounds = array<i64: 1, 10>}, {pipeline_mode = #tpu.pipeline_mode<synchronous>, transform_indices = @transform_3, window_bounds = array<i64: 10, 40>}, {pipeline_mode = #tpu.pipeline_mode<synchronous>, transform_indices = @transform_4, window_bounds = array<i64: 1, 40>}, {pipeline_mode = #tpu.pipeline_mode<synchronous>, transform_indices = @transform_5, window_bounds = array<i64: 40, 10>}, {pipeline_mode = #tpu.pipeline_mode<synchronous>, transform_indices = @transform_6, window_bounds = array<i64: 1, 10>}, {transform_indices = @transform_7, window_bounds = array<i64: 1, 1, 10>}]} {
    %c0 = arith.constant 0 : index
    %c0_0 = arith.constant 0 : index
    %c0_1 = arith.constant 0 : index
    %c0_2 = arith.constant 0 : index
    %0 = vector.load %arg1[%c0, %c0_0, %c0_1, %c0_2] : memref<1x4x40x64xf32, #tpu.memory_space<vmem>>, vector<1x4x40x64xf32>
    %1 = vector.shape_cast %0 : vector<1x4x40x64xf32> to vector<4x40x64xf32>
    %cst = arith.constant dense<0.000000e+00> : vector<4x40xf32>
    %2 = vector.multi_reduction <add>, %1, %cst [2] : vector<4x40x64xf32> to vector<4x40xf32>
    %cst_3 = arith.constant 6.400000e+01 : f32
    %3 = vector.broadcast %cst_3 : f32 to vector<4x40xf32>
    %4 = arith.divf %2, %3 : vector<4x40xf32>
    %cst_4 = arith.constant dense<0xFF800000> : vector<4x40xf32>
    %5 = vector.multi_reduction <maximumf>, %1, %cst_4 [2] : vector<4x40x64xf32> to vector<4x40xf32>
    %6 = tpu.concatenate %4, %5 in 0 : vector<4x40xf32>, vector<4x40xf32> -> vector<8x40xf32>
    %7 = arith.truncf %6 : vector<8x40xf32> to vector<8x40xbf16>
    %c0_5 = arith.constant 0 : index
    %c0_6 = arith.constant 0 : index
    %8 = vector.load %arg2[%c0_5, %c0_6] : memref<40x10xbf16, #tpu.memory_space<vmem>>, vector<40x10xbf16>
    %cst_7 = arith.constant dense<0.000000e+00> : vector<8x10xf32>
    %9 = tpu.matmul %7, %8, %cst_7 {dimension_numbers = #tpu.dot_dimension_numbers<[1], [0], [0], [1], [0, 0, 1, 1], [], []>} : vector<8x40xbf16>, vector<40x10xbf16>, vector<8x10xf32> -> vector<8x10xf32>
    %c0_8 = arith.constant 0 : index
    %c0_9 = arith.constant 0 : index
    %10 = vector.load %arg3[%c0_8, %c0_9] : memref<1x10xf32, #tpu.memory_space<vmem>>, vector<1x10xf32>
    %11 = vector.broadcast %10 : vector<1x10xf32> to vector<8x10xf32>
    %12 = arith.addf %9, %11 : vector<8x10xf32>
    %cst_10 = arith.constant 3.000000e+00 : f32
    %13 = vector.broadcast %cst_10 : f32 to vector<8x10xf32>
    %14 = arith.addf %12, %13 : vector<8x10xf32>
    %cst_11 = arith.constant 0.000000e+00 : f32
    %cst_12 = arith.constant 6.000000e+00 : f32
    %15 = vector.broadcast %cst_11 : f32 to vector<8x10xf32>
    %16 = arith.maximumf %15, %14 : vector<8x10xf32>
    %17 = vector.broadcast %cst_12 : f32 to vector<8x10xf32>
    %18 = arith.minimumf %17, %16 : vector<8x10xf32>
    %19 = arith.mulf %12, %18 : vector<8x10xf32>
    %cst_13 = arith.constant 0.166666672 : f32
    %20 = vector.broadcast %cst_13 : f32 to vector<8x10xf32>
    %21 = arith.mulf %19, %20 : vector<8x10xf32>
    %22 = arith.truncf %21 : vector<8x10xf32> to vector<8x10xbf16>
    %c0_14 = arith.constant 0 : index
    %c0_15 = arith.constant 0 : index
    %23 = vector.load %arg4[%c0_14, %c0_15] : memref<10x40xbf16, #tpu.memory_space<vmem>>, vector<10x40xbf16>
    %cst_16 = arith.constant dense<0.000000e+00> : vector<8x40xf32>
    %24 = tpu.matmul %22, %23, %cst_16 {dimension_numbers = #tpu.dot_dimension_numbers<[1], [0], [0], [1], [0, 0, 1, 1], [], []>} : vector<8x10xbf16>, vector<10x40xbf16>, vector<8x40xf32> -> vector<8x40xf32>
    %c0_17 = arith.constant 0 : index
    %c0_18 = arith.constant 0 : index
    %25 = vector.load %arg5[%c0_17, %c0_18] : memref<1x40xf32, #tpu.memory_space<vmem>>, vector<1x40xf32>
    %26 = vector.broadcast %25 : vector<1x40xf32> to vector<8x40xf32>
    %27 = arith.addf %24, %26 : vector<8x40xf32>
    %28 = vector.extract_strided_slice %27 {offsets = [0, 0], sizes = [4, 40], strides = [1, 1]} : vector<8x40xf32> to vector<4x40xf32>
    %29 = vector.extract_strided_slice %27 {offsets = [4, 0], sizes = [4, 40], strides = [1, 1]} : vector<8x40xf32> to vector<4x40xf32>
    %30 = arith.addf %28, %29 : vector<4x40xf32>
    %cst_19 = arith.constant 0.166666672 : f32
    %31 = vector.broadcast %cst_19 : f32 to vector<4x40xf32>
    %32 = arith.mulf %30, %31 : vector<4x40xf32>
    %cst_20 = arith.constant 5.000000e-01 : f32
    %33 = vector.broadcast %cst_20 : f32 to vector<4x40xf32>
    %34 = arith.addf %32, %33 : vector<4x40xf32>
    %cst_21 = arith.constant 0.000000e+00 : f32
    %cst_22 = arith.constant 1.000000e+00 : f32
    %35 = vector.broadcast %cst_21 : f32 to vector<4x40xf32>
    %36 = arith.maximumf %35, %34 : vector<4x40xf32>
    %37 = vector.broadcast %cst_22 : f32 to vector<4x40xf32>
    %38 = arith.minimumf %37, %36 : vector<4x40xf32>
    %39 = arith.mulf %38, %4 : vector<4x40xf32>
    %cst_23 = arith.constant dense<0.000000e+00> : vector<40xf32>
    %40 = vector.multi_reduction <add>, %39, %cst_23 [0] : vector<4x40xf32> to vector<40xf32>
    %41 = vector.shape_cast %40 : vector<40xf32> to vector<1x40xf32>
    %cst_24 = arith.constant 2.500000e-01 : f32
    %42 = vector.broadcast %cst_24 : f32 to vector<1x40xf32>
    %43 = arith.mulf %42, %41 : vector<1x40xf32>
    %44 = arith.truncf %43 : vector<1x40xf32> to vector<1x40xbf16>
    %c0_25 = arith.constant 0 : index
    %c0_26 = arith.constant 0 : index
    %45 = vector.load %arg6[%c0_25, %c0_26] : memref<40x10xbf16, #tpu.memory_space<vmem>>, vector<40x10xbf16>
    %cst_27 = arith.constant dense<0.000000e+00> : vector<1x10xf32>
    %46 = tpu.matmul %44, %45, %cst_27 {dimension_numbers = #tpu.dot_dimension_numbers<[1], [0], [0], [1], [0, 0, 1, 1], [], []>} : vector<1x40xbf16>, vector<40x10xbf16>, vector<1x10xf32> -> vector<1x10xf32>
    %c0_28 = arith.constant 0 : index
    %c0_29 = arith.constant 0 : index
    %47 = vector.load %arg7[%c0_28, %c0_29] : memref<1x10xf32, #tpu.memory_space<vmem>>, vector<1x10xf32>
    %48 = arith.addf %46, %47 : vector<1x10xf32>
    %c0_30 = arith.constant 0 : index
    %c0_31 = arith.constant 0 : index
    %c0_32 = arith.constant 0 : index
    %49 = vector.load %arg8[%c0_30, %c0_31, %c0_32] : memref<1x1x10xf32, #tpu.memory_space<vmem>>, vector<1x1x10xf32>
    %50 = vector.shape_cast %49 : vector<1x1x10xf32> to vector<1x10xf32>
    %51 = vector.shape_cast %48 : vector<1x10xf32> to vector<1x1x10xf32>
    tpu.vector_store %arg8[%c0_30, %c0_31, %c0_32], %51 {strides = array<i32>} : memref<1x1x10xf32, #tpu.memory_space<vmem>>, vector<1x1x10xf32>,
    return
  }
  func.func @transform_0(%arg0: i32) -> (i32, i32, i32, i32) {
    %c0_i32 = arith.constant 0 : i32
    %c0_i32_0 = arith.constant 0 : i32
    %c0_i32_1 = arith.constant 0 : i32
    %c0_i32_2 = arith.constant 0 : i32
    return %arg0, %c0_i32, %c0_i32_0, %c0_i32_1 : i32, i32, i32, i32
  }
  func.func @transform_1(%arg0: i32) -> (i32, i32) {
    %c0_i32 = arith.constant 0 : i32
    %c0_i32_0 = arith.constant 0 : i32
    %c0_i32_1 = arith.constant 0 : i32
    return %c0_i32, %c0_i32_0 : i32, i32
  }
  func.func @transform_2(%arg0: i32) -> (i32, i32) {
    %c0_i32 = arith.constant 0 : i32
    %c0_i32_0 = arith.constant 0 : i32
    %c0_i32_1 = arith.constant 0 : i32
    return %c0_i32, %c0_i32_0 : i32, i32
  }
  func.func @transform_3(%arg0: i32) -> (i32, i32) {
    %c0_i32 = arith.constant 0 : i32
    %c0_i32_0 = arith.constant 0 : i32
    %c0_i32_1 = arith.constant 0 : i32
    return %c0_i32, %c0_i32_0 : i32, i32
  }
  func.func @transform_4(%arg0: i32) -> (i32, i32) {
    %c0_i32 = arith.constant 0 : i32
    %c0_i32_0 = arith.constant 0 : i32
    %c0_i32_1 = arith.constant 0 : i32
    return %c0_i32, %c0_i32_0 : i32, i32
  }
  func.func @transform_5(%arg0: i32) -> (i32, i32) {
    %c0_i32 = arith.constant 0 : i32
    %c0_i32_0 = arith.constant 0 : i32
    %c0_i32_1 = arith.constant 0 : i32
    return %c0_i32, %c0_i32_0 : i32, i32
  }
  func.func @transform_6(%arg0: i32) -> (i32, i32) {
    %c0_i32 = arith.constant 0 : i32
    %c0_i32_0 = arith.constant 0 : i32
    %c0_i32_1 = arith.constant 0 : i32
    return %c0_i32, %c0_i32_0 : i32, i32
  }
  func.func @transform_7(%arg0: i32) -> (i32, i32, i32) {
    %c0_i32 = arith.constant 0 : i32
    %c0_i32_0 = arith.constant 0 : i32
    %c0_i32_1 = arith.constant 0 : i32
    return %arg0, %c0_i32, %c0_i32_0 : i32, i32, i32
  }
}

</mosaic_0001>

<llo_original>
// kernel: tpu_custom_call.1
$region0: #{tpu_custom_call.1}
  #allocation0 [shape = 'u32[]', space=smem, size = 0x4, offset = 0x4, fixed_abs, tag = 'smem constant byte address 0x4 - core index']
  #allocation1 [shape = 'u32[144,128]{1,0:T(1,128)}', space=vmem, size = 0x12000, scoped, tag = 'internal scratch']
  %s0 = inlined_call_operand.hbm [shape: f32[2,4,40,64], index: 0, kind: input, shape index: {}]
  %s1 = inlined_call_operand.vmem [shape: bf16[40,10], index: 1, kind: input, shape index: {}]
  %s2 = inlined_call_operand.vmem [shape: f32[1,10], index: 2, kind: input, shape index: {}]
  %s3 = inlined_call_operand.vmem [shape: bf16[10,40], index: 3, kind: input, shape index: {}]
  %s4 = inlined_call_operand.vmem [shape: f32[1,40], index: 4, kind: input, shape index: {}]
  %s5 = inlined_call_operand.vmem [shape: bf16[40,10], index: 5, kind: input, shape index: {}]
  %s6 = inlined_call_operand.vmem [shape: f32[1,10], index: 6, kind: input, shape index: {}]
  %s7 = inlined_call_operand.hbm [shape: f32[2,1,10], index: 7, kind: output, shape index: {}]
  %s8 = sld [smem:[#allocation0]]
  $region65: #{tpu_custom_call.1} parent=0
    _
  %s10 = ssub.s32 1, %s8
  %s11 = scalar_select 0, %s10, %s8
  $region1: #{tpu_custom_call.1} parent=0
    #allocation2 [shape = 'u8[163840]{0}', space=vmem, size = 0x28000, scoped, tag = 'input window, operand 0']
    #allocation3 [shape = 's32[2]{0}', space=sflag, size = 0x8, scoped, tag = 'scoped memory for tpu_custom_call.1']
    #allocation4 [shape = 's32[2]{0}', space=sflag, size = 0x8, scoped, tag = 'scoped memory for tpu_custom_call.1']
    #allocation5 [shape = 'u8[1024]{0}', space=vmem, size = 0x400, scoped, tag = 'output window, operand 0']
    %12 = vsyncpa [#allocation3], 0
    %s13 = scalar_lea.sflag [#allocation3], 1
    %14 = vsyncpa %s13, 0
    %15 = vsyncpa [#allocation4], 0
    %s16 = scalar_lea.sflag [#allocation4], 1
    %17 = vsyncpa %s16, 0
    loop: start=0, step=1, limit=4
    $region2: #{tpu_custom_call.1} parent=1 // loop_pre_header
      _
    $region3: #{tpu_custom_call.1} parent=1 // loop_header
      %s19 = sphi 0, %s23
      %p20 = scmp.ge.s32.totalorder %s19, 4
      %s29 = sphi 0, %s31
      %s32 = sphi 0, %s29
      %s33 = sphi 0, %s32
      %s49 = sphi 0, %s33
      %s53 = sphi 0, %s53
      %s55 = sphi 0, %s53
      %s56 = sphi 0, %s55
      %s70 = sphi 0, %s56
      %s74 = sphi 0, %s74
      %s76 = sphi 0, %s74
      %s77 = sphi 0, %s76
      %s91 = sphi 0, %s77
      %s95 = sphi 0, %s95
      %s97 = sphi 0, %s95
      %s98 = sphi 0, %s97
      %s112 = sphi 0, %s98
      %s116 = sphi 0, %s116
      %s118 = sphi 0, %s116
      %s119 = sphi 0, %s118
      %s133 = sphi 0, %s119
      %s137 = sphi 0, %s137
      %s139 = sphi 0, %s137
      %s140 = sphi 0, %s139
      %s154 = sphi 0, %s140
      %s158 = sphi 0, %s158
      %s160 = sphi 0, %s158
      %s161 = sphi 0, %s160
      %s175 = sphi 0, %s161
      %s181 = sphi 0, %s183
      %s184 = sphi 0, %s181
      %s185 = sphi 0, %s184
      %s201 = sphi 0, %s185
    $region4: #{tpu_custom_call.1} parent=1 // loop_header_branch
      %22 = sbr.rel (%p20) target = $region8
    $region5: #{tpu_custom_call.1} parent=1 // loop_body
      %s24 = ssub.s32 %s19, 1
      %s25 = ssub.s32 %s19, 2
      %s26 = sadd.s32 %s19, 1
      %s27 = ssub.s32 %s19, %s26
      %p28 = scmp.eq.s32.totalorder %s27, 0
      %s30 = sadd.s32 %s29, 1
      %s31 = scalar_select %p28, %s29, %s30
      %p34 = pneg %p28
      %p35 = scmp.eq.s32.totalorder %s19, 1
      %p36 = por %p34, %p35
      %p37 = scmp.ne.s32.totalorder %s29, %s32
      %p38 = scmp.eq.s32.totalorder %s19, 0
      %p39 = por %p37, %p38
      %p40 = scmp.ne.s32.totalorder %s29, %s32
      %p41 = scmp.eq.s32.totalorder %s24, 1
      %p42 = por %p40, %p41
      %p43 = scmp.ne.s32.totalorder %s32, %s33
      %p44 = scmp.eq.s32.totalorder %s24, 0
      %p45 = por %p43, %p44
      %p46 = scmp.ne.s32.totalorder %s32, %s33
      %p47 = scmp.eq.s32.totalorder %s25, 1
      %p48 = por %p46, %p47
      %p50 = scmp.ne.s32.totalorder %s33, %s49
      %p51 = scmp.eq.s32.totalorder %s25, 0
      %p52 = por %p50, %p51
      %s54 = sadd.s32 %s53, 1
      %p57 = scmp.eq.s32.totalorder %s19, 1
      %p58 = scmp.ne.s32.totalorder %s53, %s55
      %p59 = scmp.eq.s32.totalorder %s19, 0
      %p60 = por %p58, %p59
      %p61 = scmp.ne.s32.totalorder %s53, %s55
      %p62 = scmp.eq.s32.totalorder %s24, 1
      %p63 = por %p61, %p62
      %p64 = scmp.ne.s32.totalorder %s55, %s56
      %p65 = scmp.eq.s32.totalorder %s24, 0
      %p66 = por %p64, %p65
      %p67 = scmp.ne.s32.totalorder %s55, %s56
      %p68 = scmp.eq.s32.totalorder %s25, 1
      %p69 = por %p67, %p68
      %p71 = scmp.ne.s32.totalorder %s56, %s70
      %p72 = scmp.eq.s32.totalorder %s25, 0
      %p73 = por %p71, %p72
      %s75 = sadd.s32 %s74, 1
      %p78 = scmp.eq.s32.totalorder %s19, 1
      %p79 = scmp.ne.s32.totalorder %s74, %s76
      %p80 = scmp.eq.s32.totalorder %s19, 0
      %p81 = por %p79, %p80
      %p82 = scmp.ne.s32.totalorder %s74, %s76
      %p83 = scmp.eq.s32.totalorder %s24, 1
      %p84 = por %p82, %p83
      %p85 = scmp.ne.s32.totalorder %s76, %s77
      %p86 = scmp.eq.s32.totalorder %s24, 0
      %p87 = por %p85, %p86
      %p88 = scmp.ne.s32.totalorder %s76, %s77
      %p89 = scmp.eq.s32.totalorder %s25, 1
      %p90 = por %p88, %p89
      %p92 = scmp.ne.s32.totalorder %s77, %s91
      %p93 = scmp.eq.s32.totalorder %s25, 0
      %p94 = por %p92, %p93
      %s96 = sadd.s32 %s95, 1
      %p99 = scmp.eq.s32.totalorder %s19, 1
      %p100 = scmp.ne.s32.totalorder %s95, %s97
      %p101 = scmp.eq.s32.totalorder %s19, 0
      %p102 = por %p100, %p101
      %p103 = scmp.ne.s32.totalorder %s95, %s97
      %p104 = scmp.eq.s32.totalorder %s24, 1
      %p105 = por %p103, %p104
      %p106 = scmp.ne.s32.totalorder %s97, %s98
      %p107 = scmp.eq.s32.totalorder %s24, 0
      %p108 = por %p106, %p107
      %p109 = scmp.ne.s32.totalorder %s97, %s98
      %p110 = scmp.eq.s32.totalorder %s25, 1
      %p111 = por %p109, %p110
      %p113 = scmp.ne.s32.totalorder %s98, %s112
      %p114 = scmp.eq.s32.totalorder %s25, 0
      %p115 = por %p113, %p114
      %s117 = sadd.s32 %s116, 1
      %p120 = scmp.eq.s32.totalorder %s19, 1
      %p121 = scmp.ne.s32.totalorder %s116, %s118
      %p122 = scmp.eq.s32.totalorder %s19, 0
      %p123 = por %p121, %p122
      %p124 = scmp.ne.s32.totalorder %s116, %s118
      %p125 = scmp.eq.s32.totalorder %s24, 1
      %p126 = por %p124, %p125
      %p127 = scmp.ne.s32.totalorder %s118, %s119
      %p128 = scmp.eq.s32.totalorder %s24, 0
      %p129 = por %p127, %p128
      %p130 = scmp.ne.s32.totalorder %s118, %s119
      %p131 = scmp.eq.s32.totalorder %s25, 1
      %p132 = por %p130, %p131
      %p134 = scmp.ne.s32.totalorder %s119, %s133
      %p135 = scmp.eq.s32.totalorder %s25, 0
      %p136 = por %p134, %p135
      %s138 = sadd.s32 %s137, 1
      %p141 = scmp.eq.s32.totalorder %s19, 1
      %p142 = scmp.ne.s32.totalorder %s137, %s139
      %p143 = scmp.eq.s32.totalorder %s19, 0
      %p144 = por %p142, %p143
      %p145 = scmp.ne.s32.totalorder %s137, %s139
      %p146 = scmp.eq.s32.totalorder %s24, 1
      %p147 = por %p145, %p146
      %p148 = scmp.ne.s32.totalorder %s139, %s140
      %p149 = scmp.eq.s32.totalorder %s24, 0
      %p150 = por %p148, %p149
      %p151 = scmp.ne.s32.totalorder %s139, %s140
      %p152 = scmp.eq.s32.totalorder %s25, 1
      %p153 = por %p151, %p152
      %p155 = scmp.ne.s32.totalorder %s140, %s154
      %p156 = scmp.eq.s32.totalorder %s25, 0
      %p157 = por %p155, %p156
      %s159 = sadd.s32 %s158, 1
      %p162 = scmp.eq.s32.totalorder %s19, 1
      %p163 = scmp.ne.s32.totalorder %s158, %s160
      %p164 = scmp.eq.s32.totalorder %s19, 0
      %p165 = por %p163, %p164
      %p166 = scmp.ne.s32.totalorder %s158, %s160
      %p167 = scmp.eq.s32.totalorder %s24, 1
      %p168 = por %p166, %p167
      %p169 = scmp.ne.s32.totalorder %s160, %s161
      %p170 = scmp.eq.s32.totalorder %s24, 0
      %p171 = por %p169, %p170
      %p172 = scmp.ne.s32.totalorder %s160, %s161
      %p173 = scmp.eq.s32.totalorder %s25, 1
      %p174 = por %p172, %p173
      %p176 = scmp.ne.s32.totalorder %s161, %s175
      %p177 = scmp.eq.s32.totalorder %s25, 0
      %p178 = por %p176, %p177
      %s179 = ssub.s32 %s19, %s26
      %p180 = scmp.eq.s32.totalorder %s179, 0
      %s182 = sadd.s32 %s181, 1
      %s183 = scalar_select %p180, %s181, %s182
      %p186 = pneg %p180
      %p187 = scmp.eq.s32.totalorder %s19, 1
      %p188 = por %p186, %p187
      %p189 = scmp.ne.s32.totalorder %s181, %s184
      %p190 = scmp.eq.s32.totalorder %s19, 0
      %p191 = por %p189, %p190
      %p192 = scmp.ne.s32.totalorder %s181, %s184
      %p193 = scmp.eq.s32.totalorder %s24, 1
      %p194 = por %p192, %p193
      %p195 = scmp.ne.s32.totalorder %s184, %s185
      %p196 = scmp.eq.s32.totalorder %s24, 0
      %p197 = por %p195, %p196
      %p198 = scmp.ne.s32.totalorder %s184, %s185
      %p199 = scmp.eq.s32.totalorder %s25, 1
      %p200 = por %p198, %p199
      %p202 = scmp.ne.s32.totalorder %s185, %s201
      %p203 = scmp.eq.s32.totalorder %s25, 0
      %p204 = por %p202, %p203
      %p205 = scmp.le.s32.totalorder 1, %s19
      %p206 = scmp.lt.s32.totalorder %s19, 3
      %p207 = pnand %p205, %p206
      %p208 = pneg %p207
      // Predicated region
      $region9: #{tpu_custom_call.1} parent=5 // pred_check
        _
      $region10: #{tpu_custom_call.1} parent=5 // pred_check_branch
        %210 = sbr.rel (%p207) target = $region12
      $region11: #{tpu_custom_call.1} parent=5 // pred_region
        %s211 = ssub.s32 %s19, 1
        // Predicated region
        $region13: #{tpu_custom_call.1} parent=11 // pred_check
          %p212 = pneg %p66
        $region14: #{tpu_custom_call.1} parent=11 // pred_check_branch
          %214 = sbr.rel (%p212) target = $region16
        $region15: #{tpu_custom_call.1} parent=11 // pred_region
          _
        $region16: #{tpu_custom_call.1} parent=11 // pred_fallthru
          _
        // Predicated region
        $region17: #{tpu_custom_call.1} parent=11 // pred_check
          %p215 = pneg %p87
        $region18: #{tpu_custom_call.1} parent=11 // pred_check_branch
          %217 = sbr.rel (%p215) target = $region20
        $region19: #{tpu_custom_call.1} parent=11 // pred_region
          _
        $region20: #{tpu_custom_call.1} parent=11 // pred_fallthru
          _
        // Predicated region
        $region21: #{tpu_custom_call.1} parent=11 // pred_check
          %p218 = pneg %p108
        $region22: #{tpu_custom_call.1} parent=11 // pred_check_branch
          %220 = sbr.rel (%p218) target = $region24
        $region23: #{tpu_custom_call.1} parent=11 // pred_region
          _
        $region24: #{tpu_custom_call.1} parent=11 // pred_fallthru
          _
        // Predicated region
        $region25: #{tpu_custom_call.1} parent=11 // pred_check
          %p221 = pneg %p129
        $region26: #{tpu_custom_call.1} parent=11 // pred_check_branch
          %223 = sbr.rel (%p221) target = $region28
        $region27: #{tpu_custom_call.1} parent=11 // pred_region
          _
        $region28: #{tpu_custom_call.1} parent=11 // pred_fallthru
          _
        // Predicated region
        $region29: #{tpu_custom_call.1} parent=11 // pred_check
          %p224 = pneg %p150
        $region30: #{tpu_custom_call.1} parent=11 // pred_check_branch
          %226 = sbr.rel (%p224) target = $region32
        $region31: #{tpu_custom_call.1} parent=11 // pred_region
          _
        $region32: #{tpu_custom_call.1} parent=11 // pred_fallthru
          _
        // Predicated region
        $region33: #{tpu_custom_call.1} parent=11 // pred_check
          %p227 = pneg %p171
        $region34: #{tpu_custom_call.1} parent=11 // pred_check_branch
          %229 = sbr.rel (%p227) target = $region36
        $region35: #{tpu_custom_call.1} parent=11 // pred_region
          _
        $region36: #{tpu_custom_call.1} parent=11 // pred_fallthru
          _
      $region12: #{tpu_custom_call.1} parent=5 // pred_fallthru
        _
      %p230 = scmp.lt.s32.totalorder %s19, 2
      // Predicated region
      $region37: #{tpu_custom_call.1} parent=5 // pred_check
        %p231 = pneg %p230
      $region38: #{tpu_custom_call.1} parent=5 // pred_check_branch
        %233 = sbr.rel (%p231) target = $region40
      $region39: #{tpu_custom_call.1} parent=5 // pred_region
        // Predicated region
        $region41: #{tpu_custom_call.1} parent=39 // pred_check
          %p234 = pneg %p39
        $region42: #{tpu_custom_call.1} parent=39 // pred_check_branch
          %236 = sbr.rel (%p234) target = $region44
        $region43: #{tpu_custom_call.1} parent=39 // pred_region
          %s237 = sand.u32 %s29, 1
          %s238 = scalar_lea.sflag [#allocation3], %s237
          %s239 = sand.u32 %s29, 1
          %s240 = smul.addr %s239, 160
          %s241 = scalar_lea.vmem [#allocation2], %s240
          %s243 = ssub.s32 2560, 2560
          %244 = vsyncadd %s238, %s243
          %s245 = smul.addr %s19, 20
          %s246 = smul.addr %s245, 128
          %s247 = scalar_lea.hbm %s0, %s246
          %s248 = sshll.u32 %s241, 4
          %s249 = int_to_ptr.vmem [resolvable:$true] %s248
          %254 = dma.hbm_to_vmem [thread:$0]  %s247, 2560, %s249, %s238, 128, 128, 8
        $region44: #{tpu_custom_call.1} parent=39 // pred_fallthru
          _
      $region40: #{tpu_custom_call.1} parent=5 // pred_fallthru
        _
      %p255 = scmp.le.s32.totalorder 1, %s19
      %p256 = scmp.lt.s32.totalorder %s19, 3
      %p257 = pnand %p255, %p256
      %p258 = pneg %p257
      // Predicated region
      $region45: #{tpu_custom_call.1} parent=5 // pred_check
        _
      $region46: #{tpu_custom_call.1} parent=5 // pred_check_branch
        %260 = sbr.rel (%p257) target = $region48
      $region47: #{tpu_custom_call.1} parent=5 // pred_region
        %s261 = ssub.s32 %s19, 1
        %s262 = sand.u32 %s32, 1
        %s263 = scalar_lea.sflag [#allocation3], %s262
        %s264 = sand.u32 %s32, 1
        %s265 = smul.addr %s264, 160
        %s266 = scalar_lea.vmem [#allocation2], %s265
        // Predicated region
        $region49: #{tpu_custom_call.1} parent=47 // pred_check
          %p267 = pneg %p45
        $region50: #{tpu_custom_call.1} parent=47 // pred_check_branch
          %269 = sbr.rel (%p267) target = $region52
        $region51: #{tpu_custom_call.1} parent=47 // pred_region
          %270 = dma.done %s263, 2560
        $region52: #{tpu_custom_call.1} parent=47 // pred_fallthru
          _
        %s271 = sand.u32 %s32, 1
        %s272 = scalar_lea.sflag [#allocation3], %s271
        %s273 = sand.u32 %s32, 1
        %s274 = smul.addr %s273, 160
        %s275 = scalar_lea.vmem [#allocation2], %s274
        %p276 = pneg %p45
        %p277 = pneg %p42
        %p278 = pneg %p66
        %p279 = pneg %p63
        %p280 = pneg %p87
        %p281 = pneg %p84
        %p282 = pneg %p108
        %p283 = pneg %p105
        %p284 = pneg %p129
        %p285 = pneg %p126
        %p286 = pneg %p150
        %p287 = pneg %p147
        %p288 = pneg %p171
        %p289 = pneg %p168
        %p290 = pneg %p197
        %p291 = pneg %p194
        %s292 = sand.u32 %s184, 1
        %s293 = scalar_lea.sflag [#allocation4], %s292
        %s294 = sand.u32 %s184, 1
        %s295 = scalar_lea.vmem [#allocation5], %s294
        %v297 = vld [vmem:[%s266] sm:$0xff]
        %v298 = vld [vmem:[%s266 + $0x8] sm:$0xff]
        %v299 = vld [vmem:[%s266 + $0x10] sm:$0xff]
        %v300 = vld [vmem:[%s266 + $0x18] sm:$0xff]
        %v301 = vld [vmem:[%s266 + $0x20] sm:$0xff]
        %v302 = vld [vmem:[%s266 + $0x28] sm:$0xff]
        %v303 = vld [vmem:[%s266 + $0x30] sm:$0xff]
        %v304 = vld [vmem:[%s266 + $0x38] sm:$0xff]
        %v305 = vld [vmem:[%s266 + $0x40] sm:$0xff]
        %v306 = vld [vmem:[%s266 + $0x48] sm:$0xff]
        %v307 = vld [vmem:[%s266 + $0x50] sm:$0xff]
        %v308 = vld [vmem:[%s266 + $0x58] sm:$0xff]
        %v309 = vld [vmem:[%s266 + $0x60] sm:$0xff]
        %v310 = vld [vmem:[%s266 + $0x68] sm:$0xff]
        %v311 = vld [vmem:[%s266 + $0x70] sm:$0xff]
        %v312 = vld [vmem:[%s266 + $0x78] sm:$0xff]
        %v313 = vld [vmem:[%s266 + $0x80] sm:$0xff]
        %v314 = vld [vmem:[%s266 + $0x88] sm:$0xff]
        %v315 = vld [vmem:[%s266 + $0x90] sm:$0xff]
        %v316 = vld [vmem:[%s266 + $0x98] sm:$0xff]
        %vm317 = vcmask 523264
        %v318 = vsel %vm317, %v297, 0.0
        %319 = vadd.xlane.f32.xlu0 %v318
        %v320 = vpop.xlane.xlu0 %319
        %v321 = vsel %vm317, %v298, 0.0
        %322 = vadd.xlane.f32.xlu0 %v321
        %v323 = vpop.xlane.xlu0 %322
        %v324 = vsel %vm317, %v299, 0.0
        %325 = vadd.xlane.f32.xlu0 %v324
        %v326 = vpop.xlane.xlu0 %325
        %v327 = vsel %vm317, %v300, 0.0
        %328 = vadd.xlane.f32.xlu0 %v327
        %v329 = vpop.xlane.xlu0 %328
        %v330 = vsel %vm317, %v301, 0.0
        %331 = vadd.xlane.f32.xlu0 %v330
        %v332 = vpop.xlane.xlu0 %331
        %v333 = vsel %vm317, %v302, 0.0
        %334 = vadd.xlane.f32.xlu0 %v333
        %v335 = vpop.xlane.xlu0 %334
        %v336 = vsel %vm317, %v303, 0.0
        %337 = vadd.xlane.f32.xlu0 %v336
        %v338 = vpop.xlane.xlu0 %337
        %v339 = vsel %vm317, %v304, 0.0
        %340 = vadd.xlane.f32.xlu0 %v339
        %v341 = vpop.xlane.xlu0 %340
        %v342 = vsel %vm317, %v305, 0.0
        %343 = vadd.xlane.f32.xlu0 %v342
        %v344 = vpop.xlane.xlu0 %343
        %v345 = vsel %vm317, %v306, 0.0
        %346 = vadd.xlane.f32.xlu0 %v345
        %v347 = vpop.xlane.xlu0 %346
        %v348 = vsel %vm317, %v307, 0.0
        %349 = vadd.xlane.f32.xlu0 %v348
        %v350 = vpop.xlane.xlu0 %349
        %v351 = vsel %vm317, %v308, 0.0
        %352 = vadd.xlane.f32.xlu0 %v351
        %v353 = vpop.xlane.xlu0 %352
        %v354 = vsel %vm317, %v309, 0.0
        %355 = vadd.xlane.f32.xlu0 %v354
        %v356 = vpop.xlane.xlu0 %355
        %v357 = vsel %vm317, %v310, 0.0
        %358 = vadd.xlane.f32.xlu0 %v357
        %v359 = vpop.xlane.xlu0 %358
        %v360 = vsel %vm317, %v311, 0.0
        %361 = vadd.xlane.f32.xlu0 %v360
        %v362 = vpop.xlane.xlu0 %361
        %v363 = vsel %vm317, %v312, 0.0
        %364 = vadd.xlane.f32.xlu0 %v363
        %v365 = vpop.xlane.xlu0 %364
        %v366 = vsel %vm317, %v313, 0.0
        %367 = vadd.xlane.f32.xlu0 %v366
        %v368 = vpop.xlane.xlu0 %367
        %v369 = vsel %vm317, %v314, 0.0
        %370 = vadd.xlane.f32.xlu0 %v369
        %v371 = vpop.xlane.xlu0 %370
        %v372 = vsel %vm317, %v315, 0.0
        %373 = vadd.xlane.f32.xlu0 %v372
        %v374 = vpop.xlane.xlu0 %373
        %v375 = vsel %vm317, %v316, 0.0
        %376 = vadd.xlane.f32.xlu0 %v375
        %v377 = vpop.xlane.xlu0 %376
        %v378 = vrcp.pop 64.0
        %v379 = vmul.f32 %v320, %v378
        %v380 = vmul.f32 %v323, %v378
        %v381 = vmul.f32 %v326, %v378
        %v382 = vmul.f32 %v329, %v378
        %v383 = vmul.f32 %v332, %v378
        %v384 = vmul.f32 %v335, %v378
        %v385 = vmul.f32 %v338, %v378
        %v386 = vmul.f32 %v341, %v378
        %v387 = vmul.f32 %v344, %v378
        %v388 = vmul.f32 %v347, %v378
        %v389 = vmul.f32 %v350, %v378
        %v390 = vmul.f32 %v353, %v378
        %v391 = vmul.f32 %v356, %v378
        %v392 = vmul.f32 %v359, %v378
        %v393 = vmul.f32 %v362, %v378
        %v394 = vmul.f32 %v365, %v378
        %v395 = vmul.f32 %v368, %v378
        %v396 = vmul.f32 %v371, %v378
        %v397 = vmul.f32 %v374, %v378
        %v398 = vmul.f32 %v377, %v378
        %v399 = vsel %vm317, %v297, -inf
        %400 = vmax.xlane.f32.xlu0 %v399
        %v401 = vpop.xlane.xlu0 %400
        %v402 = vsel %vm317, %v298, -inf
        %403 = vmax.xlane.f32.xlu0 %v402
        %v404 = vpop.xlane.xlu0 %403
        %v405 = vsel %vm317, %v299, -inf
        %406 = vmax.xlane.f32.xlu0 %v405
        %v407 = vpop.xlane.xlu0 %406
        %v408 = vsel %vm317, %v300, -inf
        %409 = vmax.xlane.f32.xlu0 %v408
        %v410 = vpop.xlane.xlu0 %409
        %v411 = vsel %vm317, %v301, -inf
        %412 = vmax.xlane.f32.xlu0 %v411
        %v413 = vpop.xlane.xlu0 %412
        %v414 = vsel %vm317, %v302, -inf
        %415 = vmax.xlane.f32.xlu0 %v414
        %v416 = vpop.xlane.xlu0 %415
        %v417 = vsel %vm317, %v303, -inf
        %418 = vmax.xlane.f32.xlu0 %v417
        %v419 = vpop.xlane.xlu0 %418
        %v420 = vsel %vm317, %v304, -inf
        %421 = vmax.xlane.f32.xlu0 %v420
        %v422 = vpop.xlane.xlu0 %421
        %v423 = vsel %vm317, %v305, -inf
        %424 = vmax.xlane.f32.xlu0 %v423
        %v425 = vpop.xlane.xlu0 %424
        %v426 = vsel %vm317, %v306, -inf
        %427 = vmax.xlane.f32.xlu0 %v426
        %v428 = vpop.xlane.xlu0 %427
        %v429 = vsel %vm317, %v307, -inf
        %430 = vmax.xlane.f32.xlu0 %v429
        %v431 = vpop.xlane.xlu0 %430
        %v432 = vsel %vm317, %v308, -inf
        %433 = vmax.xlane.f32.xlu0 %v432
        %v434 = vpop.xlane.xlu0 %433
        %v435 = vsel %vm317, %v309, -inf
        %436 = vmax.xlane.f32.xlu0 %v435
        %v437 = vpop.xlane.xlu0 %436
        %v438 = vsel %vm317, %v310, -inf
        %439 = vmax.xlane.f32.xlu0 %v438
        %v440 = vpop.xlane.xlu0 %439
        %v441 = vsel %vm317, %v311, -inf
        %442 = vmax.xlane.f32.xlu0 %v441
        %v443 = vpop.xlane.xlu0 %442
        %v444 = vsel %vm317, %v312, -inf
        %445 = vmax.xlane.f32.xlu0 %v444
        %v446 = vpop.xlane.xlu0 %445
        %v447 = vsel %vm317, %v313, -inf
        %448 = vmax.xlane.f32.xlu0 %v447
        %v449 = vpop.xlane.xlu0 %448
        %v450 = vsel %vm317, %v314, -inf
        %451 = vmax.xlane.f32.xlu0 %v450
        %v452 = vpop.xlane.xlu0 %451
        %v453 = vsel %vm317, %v315, -inf
        %454 = vmax.xlane.f32.xlu0 %v453
        %v455 = vpop.xlane.xlu0 %454
        %v456 = vsel %vm317, %v316, -inf
        %457 = vmax.xlane.f32.xlu0 %v456
        %v458 = vpop.xlane.xlu0 %457
        %v479 = vlaneseq
        %v480 = vand.u32 %v479, 127
        %v481 = vlaneseq
        %v482 = vshrl.u32 %v481, 7
        %v483 = vsub.s32 %v480, %v482
        %v484 = vrot.slane %v379, %v483
        %v485 = vadd.s32 %v480, 4294967288
        %v486 = vlaneseq
        %v487 = vshrl.u32 %v486, 7
        %v488 = vsub.s32 %v485, %v487
        %v489 = vrot.slane %v380, %v488
        %vm490 = vcmask 130112
        %v491 = vsel %vm490, %v489, %v484
        %v492 = vadd.s32 %v480, 4294967280
        %v493 = vlaneseq
        %v494 = vshrl.u32 %v493, 7
        %v495 = vsub.s32 %v492, %v494
        %v496 = vrot.slane %v381, %v495
        %vm497 = vcmask 195712
        %v498 = vsel %vm497, %v496, %v491
        %v499 = vadd.s32 %v480, 4294967272
        %v500 = vlaneseq
        %v501 = vshrl.u32 %v500, 7
        %v502 = vsub.s32 %v499, %v501
        %v503 = vrot.slane %v382, %v502
        %vm504 = vcmask 261312
        %v505 = vsel %vm504, %v503, %v498
        %v506 = vadd.s32 %v480, 4294967264
        %v507 = vlaneseq
        %v508 = vshrl.u32 %v507, 7
        %v509 = vsub.s32 %v506, %v508
        %v510 = vrot.slane %v383, %v509
        %vm511 = vcmask 326912
        %v512 = vsel %vm511, %v510, %v505
        %v513 = vlaneseq
        %v514 = vshrl.u32 %v513, 7
        %v515 = vsub.s32 %v480, %v514
        %v516 = vrot.slane %v384, %v515
        %v517 = vlaneseq
        %v518 = vshrl.u32 %v517, 7
        %v519 = vsub.s32 %v485, %v518
        %v520 = vrot.slane %v385, %v519
        %v521 = vsel %vm490, %v520, %v516
        %v522 = vlaneseq
        %v523 = vshrl.u32 %v522, 7
        %v524 = vsub.s32 %v492, %v523
        %v525 = vrot.slane %v386, %v524
        %v526 = vsel %vm497, %v525, %v521
        %v527 = vlaneseq
        %v528 = vshrl.u32 %v527, 7
        %v529 = vsub.s32 %v499, %v528
        %v530 = vrot.slane %v387, %v529
        %v531 = vsel %vm504, %v530, %v526
        %v532 = vlaneseq
        %v533 = vshrl.u32 %v532, 7
        %v534 = vsub.s32 %v506, %v533
        %v535 = vrot.slane %v388, %v534
        %v536 = vsel %vm511, %v535, %v531
        %v537 = vlaneseq
        %v538 = vshrl.u32 %v537, 7
        %v539 = vsub.s32 %v480, %v538
        %v540 = vrot.slane %v389, %v539
        %v541 = vlaneseq
        %v542 = vshrl.u32 %v541, 7
        %v543 = vsub.s32 %v485, %v542
        %v544 = vrot.slane %v390, %v543
        %v545 = vsel %vm490, %v544, %v540
        %v546 = vlaneseq
        %v547 = vshrl.u32 %v546, 7
        %v548 = vsub.s32 %v492, %v547
        %v549 = vrot.slane %v391, %v548
        %v550 = vsel %vm497, %v549, %v545
        %v551 = vlaneseq
        %v552 = vshrl.u32 %v551, 7
        %v553 = vsub.s32 %v499, %v552
        %v554 = vrot.slane %v392, %v553
        %v555 = vsel %vm504, %v554, %v550
        %v556 = vlaneseq
        %v557 = vshrl.u32 %v556, 7
        %v558 = vsub.s32 %v506, %v557
        %v559 = vrot.slane %v393, %v558
        %v560 = vsel %vm511, %v559, %v555
        %v561 = vlaneseq
        %v562 = vshrl.u32 %v561, 7
        %v563 = vsub.s32 %v480, %v562
        %v564 = vrot.slane %v394, %v563
        %v565 = vlaneseq
        %v566 = vshrl.u32 %v565, 7
        %v567 = vsub.s32 %v485, %v566
        %v568 = vrot.slane %v395, %v567
        %v569 = vsel %vm490, %v568, %v564
        %v570 = vlaneseq
        %v571 = vshrl.u32 %v570, 7
        %v572 = vsub.s32 %v492, %v571
        %v573 = vrot.slane %v396, %v572
        %v574 = vsel %vm497, %v573, %v569
        %v575 = vlaneseq
        %v576 = vshrl.u32 %v575, 7
        %v577 = vsub.s32 %v499, %v576
        %v578 = vrot.slane %v397, %v577
        %v579 = vsel %vm504, %v578, %v574
        %v580 = vlaneseq
        %v581 = vshrl.u32 %v580, 7
        %v582 = vsub.s32 %v506, %v581
        %v583 = vrot.slane %v398, %v582
        %v584 = vsel %vm511, %v583, %v579
        %vm585 = vcmask 1041409
        %v586 = vsel %vm585, %v536, %v512
        %vm587 = vcmask 1042434
        %v588 = vsel %vm587, %v560, %v586
        %vm589 = vcmask 1043459
        %v590 = vsel %vm589, %v584, %v588
        %v612 = vlaneseq
        %v613 = vshrl.u32 %v612, 7
        %v614 = vsub.s32 %v480, %v613
        %v615 = vrot.slane %v401, %v614
        %v616 = vlaneseq
        %v617 = vshrl.u32 %v616, 7
        %v618 = vsub.s32 %v485, %v617
        %v619 = vrot.slane %v404, %v618
        %v620 = vsel %vm490, %v619, %v615
        %v621 = vlaneseq
        %v622 = vshrl.u32 %v621, 7
        %v623 = vsub.s32 %v492, %v622
        %v624 = vrot.slane %v407, %v623
        %v625 = vsel %vm497, %v624, %v620
        %v626 = vlaneseq
        %v627 = vshrl.u32 %v626, 7
        %v628 = vsub.s32 %v499, %v627
        %v629 = vrot.slane %v410, %v628
        %v630 = vsel %vm504, %v629, %v625
        %v631 = vlaneseq
        %v632 = vshrl.u32 %v631, 7
        %v633 = vsub.s32 %v506, %v632
        %v634 = vrot.slane %v413, %v633
        %v635 = vsel %vm511, %v634, %v630
        %v636 = vlaneseq
        %v637 = vshrl.u32 %v636, 7
        %v638 = vsub.s32 %v480, %v637
        %v639 = vrot.slane %v416, %v638
        %v640 = vlaneseq
        %v641 = vshrl.u32 %v640, 7
        %v642 = vsub.s32 %v485, %v641
        %v643 = vrot.slane %v419, %v642
        %v644 = vsel %vm490, %v643, %v639
        %v645 = vlaneseq
        %v646 = vshrl.u32 %v645, 7
        %v647 = vsub.s32 %v492, %v646
        %v648 = vrot.slane %v422, %v647
        %v649 = vsel %vm497, %v648, %v644
        %v650 = vlaneseq
        %v651 = vshrl.u32 %v650, 7
        %v652 = vsub.s32 %v499, %v651
        %v653 = vrot.slane %v425, %v652
        %v654 = vsel %vm504, %v653, %v649
        %v655 = vlaneseq
        %v656 = vshrl.u32 %v655, 7
        %v657 = vsub.s32 %v506, %v656
        %v658 = vrot.slane %v428, %v657
        %v659 = vsel %vm511, %v658, %v654
        %v660 = vlaneseq
        %v661 = vshrl.u32 %v660, 7
        %v662 = vsub.s32 %v480, %v661
        %v663 = vrot.slane %v431, %v662
        %v664 = vlaneseq
        %v665 = vshrl.u32 %v664, 7
        %v666 = vsub.s32 %v485, %v665
        %v667 = vrot.slane %v434, %v666
        %v668 = vsel %vm490, %v667, %v663
        %v669 = vlaneseq
        %v670 = vshrl.u32 %v669, 7
        %v671 = vsub.s32 %v492, %v670
        %v672 = vrot.slane %v437, %v671
        %v673 = vsel %vm497, %v672, %v668
        %v674 = vlaneseq
        %v675 = vshrl.u32 %v674, 7
        %v676 = vsub.s32 %v499, %v675
        %v677 = vrot.slane %v440, %v676
        %v678 = vsel %vm504, %v677, %v673
        %v679 = vlaneseq
        %v680 = vshrl.u32 %v679, 7
        %v681 = vsub.s32 %v506, %v680
        %v682 = vrot.slane %v443, %v681
        %v683 = vsel %vm511, %v682, %v678
        %v684 = vlaneseq
        %v685 = vshrl.u32 %v684, 7
        %v686 = vsub.s32 %v480, %v685
        %v687 = vrot.slane %v446, %v686
        %v688 = vlaneseq
        %v689 = vshrl.u32 %v688, 7
        %v690 = vsub.s32 %v485, %v689
        %v691 = vrot.slane %v449, %v690
        %v692 = vsel %vm490, %v691, %v687
        %v693 = vlaneseq
        %v694 = vshrl.u32 %v693, 7
        %v695 = vsub.s32 %v492, %v694
        %v696 = vrot.slane %v452, %v695
        %v697 = vsel %vm497, %v696, %v692
        %v698 = vlaneseq
        %v699 = vshrl.u32 %v698, 7
        %v700 = vsub.s32 %v499, %v699
        %v701 = vrot.slane %v455, %v700
        %v702 = vsel %vm504, %v701, %v697
        %v703 = vlaneseq
        %v704 = vshrl.u32 %v703, 7
        %v705 = vsub.s32 %v506, %v704
        %v706 = vrot.slane %v458, %v705
        %v707 = vsel %vm511, %v706, %v702
        %vm708 = vcmask 1045509
        %v709 = vsel %vm708, %v659, %v635
        %vm710 = vcmask 1046534
        %v711 = vsel %vm710, %v683, %v709
        %vm712 = vcmask 1047559
        %v713 = vsel %vm712, %v707, %v711
        %vm715 = vcmask 1043456
        %v716 = vsel %vm715, %v590, %v713
        %v717 = vpack.c.bf16 %v716, %v716
        %v718 = vld [vmem:[%s1] sm:$0xf]
        %v719 = vld [vmem:[%s1 + $0x4] sm:$0xf]
        %v720 = vld [vmem:[%s1 + $0x8] sm:$0xf]
        %v721 = vld [vmem:[%s1 + $0xc] sm:$0xf]
        %v722 = vld [vmem:[%s1 + $0x10] sm:$0xf]
        %v723 = vld [vmem:[%s2] sm:$0x1]
        %v725 = vlaneseq
        %v726 = vshrl.u32 %v725, 7
        %v727 = vsub.s32 0, %v726
        %v728 = vrot.slane %v723, %v727
        %v735 = vunpack.c.l.b16 %v718
        %v736 = vunpack.c.l.b16 %v719
        %v737 = vunpack.c.l.b16 %v720
        %v738 = vunpack.c.l.b16 %v721
        %v739 = vunpack.c.l.b16 %v722
        %v740 = vpack.c.b16 %v736, %v735
        %v741 = vpack.c.b16 %v738, %v737
        %v742 = vpack.c.b16 %v739, %v739
        %vm745 = vcmask 326656
        %v747 = vsel %vm745, %v717, 0
        %v750 = vsel %vm715, %v742, 0
        %752 = vmatprep.subr.bf16.mxu0 0
        %753 = vmatpush1.bf16.msra.mxu0 %v740
        %754 = vmatprep.subr.bf16.mxu0 0
        %755 = vmatpush1.bf16.msra.mxu0 %v741
        %756 = vmatprep.subr.bf16.mxu0 0
        %757 = vmatpush1.bf16.msra.mxu0 %v750
        %758 = vmatprep.subr.bf16.mxu0 0
        %759 = vmatpush1.bf16.msra.mxu0 0
        %760 = vmatprep.subr.bf16.mxu0 0
        %761 = vmatpush1.bf16.msra.mxu0 0
        %762 = vmatprep.subr.bf16.mxu0 0
        %763 = vmatpush1.bf16.msra.mxu0 0
        %764 = vmatprep.subr.bf16.mxu0 0
        %765 = vmatpush1.bf16.msra.mxu0 0
        %766 = vmatprep.subr.bf16.mxu0 0
        %767 = vmatpush1.bf16.msra.mxu0 0
        %768 = vmatprep.subr.bf16.mxu0 0
        %769 = vmatpush1.bf16.msra.mxu0 0
        %770 = vmatprep.subr.bf16.mxu0 0
        %771 = vmatpush1.bf16.msra.mxu0 0
        %772 = vmatprep.subr.bf16.mxu0 0
        %773 = vmatpush1.bf16.msra.mxu0 0
        %774 = vmatprep.subr.bf16.mxu0 0
        %775 = vmatpush1.bf16.msra.mxu0 0
        %776 = vmatprep.subr.bf16.mxu0 0
        %777 = vmatpush1.bf16.msra.mxu0 0
        %778 = vmatprep.subr.bf16.mxu0 0
        %779 = vmatpush1.bf16.msra.mxu0 0
        %780 = vmatprep.subr.bf16.mxu0 0
        %781 = vmatpush1.bf16.msra.mxu0 0
        %782 = vmatprep.subr.bf16.mxu0 0
        %783 = vmatpush1.bf16.msra.mxu0 0
        %784 = vmatprep.mubr.bf16.mxu0 0
        %785 = vmatmul.mubr.bf16.gmra.mrb[0].mxu0 %v747
        %v786 = vpop.f32.mrb[0].mxu0
        %v787 = vadd.f32 %v728, %v786
        %v788 = vpop.f32.mrb[0].mxu0
        %v789 = vpop.f32.mrb[0].mxu0
        %v790 = vpop.f32.mrb[0].mxu0
        %791 = vdwg.mxu0
        %v792 = vadd.f32 %v787, 3.0
        %v793 = vmax.f32 %v792, 0.0
        %v794 = vmin.f32 %v793, 6.0
        %v795 = vmul.f32 %v787, %v794
        %v796 = vmul.f32 %v795, 0.16666667
        %v797 = vpack.c.bf16 %v796, %v796
        %v798 = vld [vmem:[%s3] sm:$0xf]
        %v799 = vld [vmem:[%s3 + $0x4] sm:$0x1]
        %v800 = vld [vmem:[%s4] sm:$0x1]
        %v802 = vlaneseq
        %v803 = vshrl.u32 %v802, 7
        %v804 = vsub.s32 0, %v803
        %v805 = vrot.slane %v800, %v804
        %v809 = vunpack.c.l.b16 %v798
        %v810 = vunpack.c.l.b16 %v799
        %v811 = vpack.c.b16 %v810, %v809
        %vm812 = vcmask 80896
        %v814 = vsel %vm812, %v797, 0
        %vm816 = vcmask 1044480
        %v818 = vsel %vm816, %v811, 0
        %820 = vmatprep.subr.bf16.mxu0 0
        %821 = vmatpush1.bf16.msra.mxu0 %v818
        %822 = vmatprep.subr.bf16.mxu0 0
        %823 = vmatpush1.bf16.msra.mxu0 0
        %824 = vmatprep.subr.bf16.mxu0 0
        %825 = vmatpush1.bf16.msra.mxu0 0
        %826 = vmatprep.subr.bf16.mxu0 0
        %827 = vmatpush1.bf16.msra.mxu0 0
        %828 = vmatprep.subr.bf16.mxu0 0
        %829 = vmatpush1.bf16.msra.mxu0 0
        %830 = vmatprep.subr.bf16.mxu0 0
        %831 = vmatpush1.bf16.msra.mxu0 0
        %832 = vmatprep.subr.bf16.mxu0 0
        %833 = vmatpush1.bf16.msra.mxu0 0
        %834 = vmatprep.subr.bf16.mxu0 0
        %835 = vmatpush1.bf16.msra.mxu0 0
        %836 = vmatprep.subr.bf16.mxu0 0
        %837 = vmatpush1.bf16.msra.mxu0 0
        %838 = vmatprep.subr.bf16.mxu0 0
        %839 = vmatpush1.bf16.msra.mxu0 0
        %840 = vmatprep.subr.bf16.mxu0 0
        %841 = vmatpush1.bf16.msra.mxu0 0
        %842 = vmatprep.subr.bf16.mxu0 0
        %843 = vmatpush1.bf16.msra.mxu0 0
        %844 = vmatprep.subr.bf16.mxu0 0
        %845 = vmatpush1.bf16.msra.mxu0 0
        %846 = vmatprep.subr.bf16.mxu0 0
        %847 = vmatpush1.bf16.msra.mxu0 0
        %848 = vmatprep.subr.bf16.mxu0 0
        %849 = vmatpush1.bf16.msra.mxu0 0
        %850 = vmatprep.subr.bf16.mxu0 0
        %851 = vmatpush1.bf16.msra.mxu0 0
        %852 = vmatprep.mubr.bf16.mxu0 0
        %853 = vmatmul.mubr.bf16.gmra.mrb[0].mxu0 %v814
        %v854 = vpop.f32.mrb[0].mxu0
        %v855 = vadd.f32 %v805, %v854
        %v856 = vpop.f32.mrb[0].mxu0
        %v857 = vpop.f32.mrb[0].mxu0
        %v858 = vpop.f32.mrb[0].mxu0
        %859 = vdwg.mxu0
        %v861 = vrot.slane %v855, 4
        %v863 = vadd.f32 %v855, %v861
        %v864 = vmul.f32 %v863, 0.16666667
        %v865 = vadd.f32 %v864, 0.5
        %v866 = vmax.f32 %v865, 0.0
        %v867 = vmin.f32 %v866, 1.0
        %v868 = vmul.f32 %v867, %v590
        %vm869 = vcmask 322560
        %v870 = vsel %vm869, %v868, 0.0
        %v871 = vrot.slane %v870, 4
        %v872 = vadd.f32 %v870, %v871
        %v873 = vrot.slane %v872, 2
        %v874 = vadd.f32 %v872, %v873
        %v875 = vrot.slane %v874, 1
        %v876 = vadd.f32 %v874, %v875
        %v877 = vmul.f32 %v876, 0.25
        %v878 = vpack.c.bf16 %v877, %v877
        %v879 = vld [vmem:[%s5] sm:$0xf]
        %v880 = vld [vmem:[%s5 + $0x4] sm:$0xf]
        %v881 = vld [vmem:[%s5 + $0x8] sm:$0xf]
        %v882 = vld [vmem:[%s5 + $0xc] sm:$0xf]
        %v883 = vld [vmem:[%s5 + $0x10] sm:$0xf]
        %v884 = vld [vmem:[%s6] sm:$0x1]
        %v890 = vunpack.c.l.b16 %v879
        %v891 = vunpack.c.l.b16 %v880
        %v892 = vunpack.c.l.b16 %v881
        %v893 = vunpack.c.l.b16 %v882
        %v894 = vunpack.c.l.b16 %v883
        %v895 = vpack.c.b16 %v891, %v890
        %v896 = vpack.c.b16 %v893, %v892
        %v897 = vpack.c.b16 %v894, %v894
        %v901 = vsel %vm745, %v878, 0
        %v904 = vsel %vm715, %v897, 0
        %906 = vmatprep.subr.bf16.mxu0 0
        %907 = vmatpush1.bf16.msra.mxu0 %v895
        %908 = vmatprep.subr.bf16.mxu0 0
        %909 = vmatpush1.bf16.msra.mxu0 %v896
        %910 = vmatprep.subr.bf16.mxu0 0
        %911 = vmatpush1.bf16.msra.mxu0 %v904
        %912 = vmatprep.subr.bf16.mxu0 0
        %913 = vmatpush1.bf16.msra.mxu0 0
        %914 = vmatprep.subr.bf16.mxu0 0
        %915 = vmatpush1.bf16.msra.mxu0 0
        %916 = vmatprep.subr.bf16.mxu0 0
        %917 = vmatpush1.bf16.msra.mxu0 0
        %918 = vmatprep.subr.bf16.mxu0 0
        %919 = vmatpush1.bf16.msra.mxu0 0
        %920 = vmatprep.subr.bf16.mxu0 0
        %921 = vmatpush1.bf16.msra.mxu0 0
        %922 = vmatprep.subr.bf16.mxu0 0
        %923 = vmatpush1.bf16.msra.mxu0 0
        %924 = vmatprep.subr.bf16.mxu0 0
        %925 = vmatpush1.bf16.msra.mxu0 0
        %926 = vmatprep.subr.bf16.mxu0 0
        %927 = vmatpush1.bf16.msra.mxu0 0
        %928 = vmatprep.subr.bf16.mxu0 0
        %929 = vmatpush1.bf16.msra.mxu0 0
        %930 = vmatprep.subr.bf16.mxu0 0
        %931 = vmatpush1.bf16.msra.mxu0 0
        %932 = vmatprep.subr.bf16.mxu0 0
        %933 = vmatpush1.bf16.msra.mxu0 0
        %934 = vmatprep.subr.bf16.mxu0 0
        %935 = vmatpush1.bf16.msra.mxu0 0
        %936 = vmatprep.subr.bf16.mxu0 0
        %937 = vmatpush1.bf16.msra.mxu0 0
        %938 = vmatprep.mubr.bf16.mxu0 0
        %939 = vmatmul.mubr.bf16.gmra.mrb[0].mxu0 %v901
        %v940 = vpop.f32.mrb[0].mxu0
        %v941 = vadd.f32 %v884, %v940
        %v942 = vpop.f32.mrb[0].mxu0
        %v943 = vpop.f32.mrb[0].mxu0
        %v944 = vpop.f32.mrb[0].mxu0
        %945 = vdwg.mxu0
        %vm946 = vcmask 73728
        %947 = vst.msk [vmem:[%s295] sm:$0x1] %vm946, %v941
        %s948 = sand.u32 %s184, 1
        %s949 = scalar_lea.sflag [#allocation4], %s948
        %s950 = sand.u32 %s184, 1
        %s951 = scalar_lea.vmem [#allocation5], %s950
        // Predicated region
        $region53: #{tpu_custom_call.1} parent=47 // pred_check
          %p952 = pneg %p194
        $region54: #{tpu_custom_call.1} parent=47 // pred_check_branch
          %954 = sbr.rel (%p952) target = $region56
        $region55: #{tpu_custom_call.1} parent=47 // pred_region
          %s956 = ssub.s32 16, 16
          %957 = vsyncadd %s949, %s956
          %s958 = smul.addr %s24, 16
          %s959 = scalar_lea.hbm %s7, %s958
          %s961 = sshll.u32 %s951, 4
          %s962 = int_to_ptr.vmem [resolvable:$true] %s961
          %964 = dma.vmem_to_hbm [thread:$0]  %s962, 16, %s959, %s949
        $region56: #{tpu_custom_call.1} parent=47 // pred_fallthru
          _
      $region48: #{tpu_custom_call.1} parent=5 // pred_fallthru
        _
      %p965 = scmp.le.s32.totalorder 2, %s19
      // Predicated region
      $region57: #{tpu_custom_call.1} parent=5 // pred_check
        %p966 = pneg %p965
      $region58: #{tpu_custom_call.1} parent=5 // pred_check_branch
        %968 = sbr.rel (%p966) target = $region60
      $region59: #{tpu_custom_call.1} parent=5 // pred_region
        %s969 = ssub.s32 %s19, 2
        // Predicated region
        $region61: #{tpu_custom_call.1} parent=59 // pred_check
          %p970 = pneg %p200
        $region62: #{tpu_custom_call.1} parent=59 // pred_check_branch
          %972 = sbr.rel (%p970) target = $region64
        $region63: #{tpu_custom_call.1} parent=59 // pred_region
          %s973 = sand.u32 %s185, 1
          %s974 = scalar_lea.sflag [#allocation4], %s973
          %s975 = sand.u32 %s185, 1
          %s976 = scalar_lea.vmem [#allocation5], %s975
          %977 = dma.done %s974, 16
        $region64: #{tpu_custom_call.1} parent=59 // pred_fallthru
          _
      $region60: #{tpu_custom_call.1} parent=5 // pred_fallthru
        _
    $region6: #{tpu_custom_call.1} parent=1 // loop_footer
      %s23 = sadd.s32 1, %s19
    $region7: #{tpu_custom_call.1} parent=1 // loop_footer_branch
      %18 = sbr.rel target = $region3
    $region8: #{tpu_custom_call.1} parent=1 // loop_exit
      _
    %978 = vsyncpa [#allocation3], 1
    %s979 = scalar_lea.sflag [#allocation3], 1
    %980 = vsyncpa %s979, 1
    %981 = vsyncpa [#allocation4], 1
    %s982 = scalar_lea.sflag [#allocation4], 1
    %983 = vsyncpa %s982, 1

</llo_original>
